<compile_context>
chip_gen: v7x
topology: tpu7x:2x2x1
jax: 0.10.0
libtpu: 0.0.40
codegen_flags: <defaults>
</compile_context>

<pallas_src>
import functools

import jax
import jax.numpy as jnp
import numpy as np
from jax.experimental import pallas as pl
from jax.experimental.pallas import tpu as pltpu


# --------------------------------------------------------------------------
# Pallas linear: y = x @ W^T + b, tiled over the token (M) axis.
#   x2d: (M, K) f32 ; w: (Nout, K) (PyTorch Linear layout) ; b: (Nout,) or None
# --------------------------------------------------------------------------
def _linear_kernel(x_ref, w_ref, b_ref, o_ref):
    x = x_ref[...].astype(jnp.bfloat16)
    w = w_ref[...].astype(jnp.bfloat16)
    acc = jax.lax.dot_general(x, w, (((1,), (1,)), ((), ())),   # x @ w^T
                              preferred_element_type=jnp.float32)
    o_ref[...] = (acc + b_ref[...]).astype(o_ref.dtype)


def pallas_linear(x2d, w, b=None, *, tile_m=512):
    M, K = x2d.shape
    Nout = w.shape[0]
    bias = (jnp.zeros((1, Nout), jnp.float32) if b is None
            else jnp.asarray(b, jnp.float32).reshape(1, Nout))
    tm = min(tile_m, M)
    return pl.pallas_call(
        _linear_kernel,
        out_shape=jax.ShapeDtypeStruct((M, Nout), x2d.dtype),
        grid=(pl.cdiv(M, tm),),
        in_specs=[
            pl.BlockSpec((tm, K), lambda i: (i, 0)),
            pl.BlockSpec((Nout, K), lambda i: (0, 0)),   # weight stays resident
            pl.BlockSpec((1, Nout), lambda i: (0, 0)),
        ],
        out_specs=pl.BlockSpec((tm, Nout), lambda i: (i, 0)),
        compiler_params=pltpu.CompilerParams(
            dimension_semantics=("parallel",),
            vmem_limit_bytes=64 * 1024 * 1024),
    )(x2d, w, bias)


# --------------------------------------------------------------------------
# Fused attention kernel: one (batch, T0-block) tile per grid step.
# Processes ALL heads, performs the joint ctx+self softmax in f32, and fuses
# the output projection so the store is a single lane-dense (L, C) tile.
# --------------------------------------------------------------------------
def _attn_kernel(mask_ref, qkv_ref, kctx_ref, vctx_ref, wproj_ref, bproj_ref,
                 o_ref, *, scale, num_heads, num_frames, latent_size):
    H, T, L = num_heads, num_frames, latent_size
    C = qkv_ref.shape[-1] // 3
    hd = C // H
    TL = T * L
    b = pl.program_id(0)

    qkv = qkv_ref[...].reshape(L, 3 * C)       # (L, 3C)  natural qkv layout
    kctx = kctx_ref[...].reshape(TL, C)        # (T*L, C) (L is a sublane mult.)
    vctx = vctx_ref[...].reshape(TL, C)        # (T*L, C)

    # Additive context-key bias from ctx_mask (scalar reads from SMEM).
    # Finite large-negative instead of -inf: even a fully masked context frame
    # cannot produce NaN because the self branch is always unmasked.
    frame = jax.lax.broadcasted_iota(jnp.int32, (1, TL), 1) // L
    bias = jnp.zeros((1, TL), jnp.float32)
    for t in range(T):
        invalid = mask_ref[b, t] == 0
        bias = jnp.where(jnp.logical_and(invalid, frame == t), -1e30, bias)

    # bf16 operands for the MXU; softmax math stays in f32.
    q_all = (qkv[:, 0 * C:1 * C] * scale).astype(jnp.bfloat16)   # pre-scaled q
    k_self = qkv[:, 1 * C:2 * C].astype(jnp.bfloat16)
    v_self = qkv[:, 2 * C:3 * C].astype(jnp.bfloat16)
    kctx_b = kctx.astype(jnp.bfloat16)
    vctx_b = vctx.astype(jnp.bfloat16)
    wproj = wproj_ref[...].astype(jnp.bfloat16)                  # (C, C)

    ct = (((1,), (1,)), ((), ()))   # a @ b^T

    acc = jnp.zeros((L, C), jnp.float32)
    for h in range(H):
        sl = slice(h * hd, (h + 1) * hd)
        q_h = q_all[:, sl]                                       # (L, hd)
        s_ctx = jax.lax.dot_general(q_h, kctx_b[:, sl], ct,
                                    preferred_element_type=jnp.float32) + bias
        s_self = jax.lax.dot_general(q_h, k_self[:, sl], ct,
                                     preferred_element_type=jnp.float32)
        m = jnp.maximum(jnp.max(s_ctx, axis=-1, keepdims=True),
                        jnp.max(s_self, axis=-1, keepdims=True))
        e_ctx = jnp.exp(s_ctx - m)
        e_self = jnp.exp(s_self - m)
        denom = (jnp.sum(e_ctx, axis=-1, keepdims=True)
                 + jnp.sum(e_self, axis=-1, keepdims=True))
        o_h = (jnp.dot(e_ctx.astype(jnp.bfloat16), vctx_b[:, sl],
                       preferred_element_type=jnp.float32)
               + jnp.dot(e_self.astype(jnp.bfloat16), v_self[:, sl],
                         preferred_element_type=jnp.float32))
        o_h = o_h * pl.reciprocal(denom, approx=True)            # (L, hd) f32
        # Fused output projection: sum_h o_h @ W_proj[:, h*hd:(h+1)*hd]^T.
        acc = acc + jax.lax.dot_general(o_h.astype(jnp.bfloat16), wproj[:, sl],
                                        ct, preferred_element_type=jnp.float32)

    o_ref[0, 0] = (acc + bproj_ref[...]).astype(o_ref.dtype)


# --------------------------------------------------------------------------
# Full forward (eval-mode semantics of Skip2Attention.forward)
# --------------------------------------------------------------------------
def skip2_attention(x, x_ctx, dx_ctx, ctx_mask, params, num_heads, latent_size):
    B, T, N, C = dx_ctx.shape
    L = latent_size
    T0 = N // L
    H = num_heads
    hd = C // H
    scale = hd ** (-0.5)
    TL = T * L

    # Projections on natural (flattened-token, channel) layouts.  No wrapper
    # transposes: all downstream selection is via index_maps + lane slices.
    qkv = pallas_linear(x.reshape(B * T0 * L, C), params["w_qkv"])
    qkv = qkv.reshape(B, T0, L, 3 * C)

    kctx = pallas_linear(dx_ctx.reshape(B * T * N, C), params["w_k"])
    kctx = kctx.reshape(B, T, T0, L, C)

    vctx = pallas_linear(x_ctx.reshape(B * TL, C), params["w_v"])
    vctx = vctx.reshape(B, TL, C)

    mask_i32 = ctx_mask.astype(jnp.int32)                        # (B, T) -> SMEM
    bproj = jnp.asarray(params["b_proj"], jnp.float32).reshape(1, C)

    kernel = functools.partial(_attn_kernel, scale=scale, num_heads=H,
                               num_frames=T, latent_size=L)

    out = pl.pallas_call(
        kernel,
        out_shape=jax.ShapeDtypeStruct((B, T0, L, C), jnp.float32),
        grid_spec=pltpu.PrefetchScalarGridSpec(
            num_scalar_prefetch=1,
            grid=(B, T0),
            in_specs=[
                # index_maps receive the scalar-prefetch ref as a trailing arg.
                pl.BlockSpec((1, 1, L, 3 * C), lambda b, t, m: (b, t, 0, 0)),
                pl.BlockSpec((1, T, 1, L, C), lambda b, t, m: (b, 0, t, 0, 0)),
                pl.BlockSpec((1, TL, C), lambda b, t, m: (b, 0, 0)),  # T0-invariant
                pl.BlockSpec((C, C), lambda b, t, m: (0, 0)),         # resident
                pl.BlockSpec((1, C), lambda b, t, m: (0, 0)),         # resident
            ],
            out_specs=pl.BlockSpec((1, 1, L, C), lambda b, t, m: (b, t, 0, 0)),
        ),
        compiler_params=pltpu.CompilerParams(
            dimension_semantics=("parallel", "arbitrary"),
            vmem_limit_bytes=64 * 1024 * 1024),
    )(mask_i32, qkv, kctx, vctx, params["w_proj"], bproj)

    return out.reshape(B, T0 * L, C)


# --------------------------------------------------------------------------
# Pure-JAX reference (mirrors the PyTorch forward line by line, eval mode)
# --------------------------------------------------------------------------
def ref_forward(x, x_ctx, dx_ctx, ctx_mask, params, num_heads, latent_size):
    B, T, N, C = dx_ctx.shape
    L = latent_size
    T0 = N // L
    H = num_heads
    hd = C // H
    scale = hd ** (-0.5)

    qkv = (x @ params["w_qkv"].T).reshape(B, T0 * L, 3, H, hd)
    qkv = jnp.transpose(qkv, (2, 0, 3, 1, 4))
    q, k, v = qkv[0], qkv[1], qkv[2]                       # (B,H,T0*L,hd)

    k_ctx = (dx_ctx @ params["w_k"].T).reshape(B, T, T0, L, H, hd)
    k_ctx = jnp.transpose(k_ctx, (0, 4, 2, 1, 3, 5))       # (B,H,T0,T,L,hd)
    v_ctx = (x_ctx @ params["w_v"].T).reshape(B, -1, H, hd)
    v_ctx = jnp.transpose(v_ctx, (0, 2, 1, 3))             # (B,H,T*L,hd)

    q5 = q.reshape(B, H, T0, L, hd)
    attn = jnp.einsum("bhold,bhotkd->bhotlk", q5, k_ctx) * scale   # (B,H,T0,T,L,L)
    attn = jnp.transpose(attn, (0, 1, 2, 4, 3, 5)).reshape(B, H, T0 * L, T, L)
    mask = (~ctx_mask).reshape(B, 1, 1, T, 1)
    attn = jnp.where(mask, -jnp.inf, attn)

    self_attn = jnp.einsum("bhold,bhokd->bholk",
                           q5, k.reshape(B, H, T0, L, hd)) * scale
    self_attn = self_attn.reshape(B, H, T0 * L, 1, L)

    attn = jnp.concatenate([attn, self_attn], axis=-2)
    attn = attn.reshape(B, H, T0 * L, (T + 1) * L)
    attn = jax.nn.softmax(attn, axis=-1)

    xo = jnp.einsum("bhqk,bhkd->bhqd", attn[..., :-L], v_ctx)
    xo = xo + jnp.einsum("bholk,bhokd->bhold",
                         attn[..., -L:].reshape(B, H, T0, L, L),
                         v.reshape(B, H, T0, L, hd)).reshape(B, H, T0 * L, hd)
    xo = jnp.transpose(xo, (0, 2, 1, 3)).reshape(B, T0 * L, C)
    return xo @ params["w_proj"].T + params["b_proj"]


# --------------------------------------------------------------------------
if __name__ == "__main__":
    B, H, L, T0, T = 2, 2, 8, 2, 3
    C = 32
    N = T0 * L                       # 16
    num_seeds = T - T0               # kept for parameter-level consistency

    key = jax.random.PRNGKey(0)
    ks = jax.random.split(key, 9)

    params = {
        "w_qkv": jax.random.normal(ks[0], (3 * C, C), jnp.float32) * 0.1,
        "w_k":   jax.random.normal(ks[1], (C, C), jnp.float32) * 0.1,
        "w_v":   jax.random.normal(ks[2], (C, C), jnp.float32) * 0.1,
        "w_proj": jax.random.normal(ks[3], (C, C), jnp.float32) * 0.1,
        "b_proj": jax.random.normal(ks[4], (C,), jnp.float32) * 0.1,
    }

    x = jax.random.normal(ks[5], (B, T0 * L, C), jnp.float32)
    x_ctx = jax.random.normal(ks[6], (B, T * L, C), jnp.float32)
    dx_ctx = jax.random.normal(ks[7], (B, T, N, C), jnp.float32)
    ctx_mask = jnp.array([[True, True, False],
                          [True, True, True]], dtype=bool)

    out = skip2_attention(x, x_ctx, dx_ctx, ctx_mask, params,
                          num_heads=H, latent_size=L)
    out = jax.block_until_ready(out)

    ref = ref_forward(x, x_ctx, dx_ctx, ctx_mask, params,
                      num_heads=H, latent_size=L)
    ref = jax.block_until_ready(ref)

    # bf16 MXU operands in the kernel vs default-precision f32 reference:
    # validate at ~1e-2 rather than 1e-3.
    np.testing.assert_allclose(np.asarray(out), np.asarray(ref),
                               rtol=2e-2, atol=2e-2)
    print("KERNEL_OK")
</pallas_src>

<mosaic_0001>
module attributes {stable_mosaic.version = 11 : i64} {
  func.func @_linear_kernel(%arg0: i32, %arg1: memref<32x32xf32, #tpu.memory_space<vmem>>, %arg2: memref<96x32xf32, #tpu.memory_space<vmem>>, %arg3: memref<1x96xf32, #tpu.memory_space<vmem>>, %arg4: memref<32x96xf32, #tpu.memory_space<vmem>>) attributes {dimension_semantics = [#tpu.dimension_semantics<parallel>], iteration_bounds = array<i64: 1>, scalar_prefetch = 0 : i64, scratch_operands = 0 : i64, tpu.core_type = #tpu.core_type<tc>, window_params = [{transform_indices = @transform_0, window_bounds = array<i64: 32, 32>}, {pipeline_mode = #tpu.pipeline_mode<synchronous>, transform_indices = @transform_1, window_bounds = array<i64: 96, 32>}, {pipeline_mode = #tpu.pipeline_mode<synchronous>, transform_indices = @transform_2, window_bounds = array<i64: 1, 96>}, {transform_indices = @transform_3, window_bounds = array<i64: 32, 96>}]} {
    %c0 = arith.constant 0 : index
    %c0_0 = arith.constant 0 : index
    %0 = vector.load %arg1[%c0, %c0_0] : memref<32x32xf32, #tpu.memory_space<vmem>>, vector<32x32xf32>
    %1 = arith.truncf %0 : vector<32x32xf32> to vector<32x32xbf16>
    %c0_1 = arith.constant 0 : index
    %c0_2 = arith.constant 0 : index
    %2 = vector.load %arg2[%c0_1, %c0_2] : memref<96x32xf32, #tpu.memory_space<vmem>>, vector<96x32xf32>
    %3 = arith.truncf %2 : vector<96x32xf32> to vector<96x32xbf16>
    %cst = arith.constant dense<0.000000e+00> : vector<32x96xf32>
    %4 = tpu.matmul %1, %3, %cst {dimension_numbers = #tpu.dot_dimension_numbers<[1], [1], [0], [0], [0, 0, 1, 0], [], []>} : vector<32x32xbf16>, vector<96x32xbf16>, vector<32x96xf32> -> vector<32x96xf32>
    %c0_3 = arith.constant 0 : index
    %c0_4 = arith.constant 0 : index
    %5 = vector.load %arg3[%c0_3, %c0_4] : memref<1x96xf32, #tpu.memory_space<vmem>>, vector<1x96xf32>
    %6 = vector.broadcast %5 : vector<1x96xf32> to vector<32x96xf32>
    %7 = arith.addf %4, %6 : vector<32x96xf32>
    %c0_5 = arith.constant 0 : index
    %c0_6 = arith.constant 0 : index
    %8 = vector.load %arg4[%c0_5, %c0_6] : memref<32x96xf32, #tpu.memory_space<vmem>>, vector<32x96xf32>
    tpu.vector_store %arg4[%c0_5, %c0_6], %7 {strides = array<i32>} : memref<32x96xf32, #tpu.memory_space<vmem>>, vector<32x96xf32>,
    return
  }
  func.func @transform_0(%arg0: i32) -> (i32, i32) {
    %c0_i32 = arith.constant 0 : i32
    %c0_i32_0 = arith.constant 0 : i32
    return %arg0, %c0_i32 : i32, i32
  }
  func.func @transform_1(%arg0: i32) -> (i32, i32) {
    %c0_i32 = arith.constant 0 : i32
    %c0_i32_0 = arith.constant 0 : i32
    %c0_i32_1 = arith.constant 0 : i32
    return %c0_i32, %c0_i32_0 : i32, i32
  }
  func.func @transform_2(%arg0: i32) -> (i32, i32) {
    %c0_i32 = arith.constant 0 : i32
    %c0_i32_0 = arith.constant 0 : i32
    %c0_i32_1 = arith.constant 0 : i32
    return %c0_i32, %c0_i32_0 : i32, i32
  }
  func.func @transform_3(%arg0: i32) -> (i32, i32) {
    %c0_i32 = arith.constant 0 : i32
    %c0_i32_0 = arith.constant 0 : i32
    return %arg0, %c0_i32 : i32, i32
  }
}

</mosaic_0001>

<llo_original>
// kernel: tpu_custom_call.1
$region0: #{tpu_custom_call.1}
  #allocation0 [shape = 'u32[]', space=smem, size = 0x4, offset = 0x4, fixed_abs, tag = 'smem constant byte address 0x4 - core index']
  #allocation1 [shape = 'u32[144,128]{1,0:T(1,128)}', space=vmem, size = 0x12000, scoped, tag = 'internal scratch']
  %s0 = inlined_call_operand.hbm [shape: f32[32,32], index: 0, kind: input, shape index: {}]
  %s1 = inlined_call_operand.hbm [shape: f32[96,32], index: 1, kind: input, shape index: {}]
  %s2 = inlined_call_operand.hbm [shape: f32[1,96], index: 2, kind: input, shape index: {}]
  %s3 = inlined_call_operand.hbm [shape: f32[32,96], index: 3, kind: output, shape index: {}]
  %s4 = sld [smem:[#allocation0]]
  $region34: #{tpu_custom_call.1} parent=0
    _
  %s6 = ssub.s32 1, %s4
  %s7 = scalar_select 0, %s6, %s4
  $region1: #{tpu_custom_call.1} parent=0
    #allocation2 [shape = 'u8[16384]{0}', space=vmem, size = 0x4000, scoped, tag = 'input window, operand 0, single buffered']
    #allocation3 [shape = 's32[1]{0}', space=sflag, size = 0x4, scoped, tag = 'scoped memory for tpu_custom_call.1']
    #allocation4 [shape = 's32[1]{0}', space=sflag, size = 0x4, scoped, tag = 'scoped memory for tpu_custom_call.1']
    #allocation5 [shape = 'u8[49152]{0}', space=vmem, size = 0xc000, scoped, tag = 'input window, operand 1, single buffered']
    #allocation6 [shape = 's32[1]{0}', space=sflag, size = 0x4, scoped, tag = 'scoped memory for tpu_custom_call.1']
    #allocation7 [shape = 'u8[512]{0}', space=vmem, size = 0x400, scoped, tag = 'input window, operand 2, single buffered']
    #allocation8 [shape = 'u8[16384]{0}', space=vmem, size = 0x4000, scoped, tag = 'output window, operand 0, single buffered']
    %8 = vsyncpa [#allocation3], 0
    %9 = vsyncpa [#allocation6], 0
    %10 = vsyncpa [#allocation4], 0
    // Predicated region
    $region2: #{tpu_custom_call.1} parent=1 // pred_check
      _
    $region3: #{tpu_custom_call.1} parent=1 // pred_check_branch
      %12 = sbr.rel (0) target = $region5
    $region4: #{tpu_custom_call.1} parent=1 // pred_region
      %s14 = ssub.s32 512, 512
      %15 = vsyncadd [#allocation3], %s14
      %s16 = sshll.u32 [#allocation2], 4
      %s17 = int_to_ptr.vmem [resolvable:$true] %s16
      %22 = dma.hbm_to_vmem [thread:$0]  %s0, 512, %s17, [#allocation3], 128, 128, 8
    $region5: #{tpu_custom_call.1} parent=1 // pred_fallthru
      _
    // Predicated region
    $region6: #{tpu_custom_call.1} parent=1 // pred_check
      _
    $region7: #{tpu_custom_call.1} parent=1 // pred_check_branch
      %24 = sbr.rel (0) target = $region9
    $region8: #{tpu_custom_call.1} parent=1 // pred_region
      %s26 = ssub.s32 1536, 1536
      %27 = vsyncadd [#allocation6], %s26
      %s28 = sshll.u32 [#allocation5], 4
      %s29 = int_to_ptr.vmem [resolvable:$true] %s28
      %34 = dma.hbm_to_vmem [thread:$0]  %s1, 1536, %s29, [#allocation6], 128, 128, 8
    $region9: #{tpu_custom_call.1} parent=1 // pred_fallthru
      _
    // Predicated region
    $region10: #{tpu_custom_call.1} parent=1 // pred_check
      _
    $region11: #{tpu_custom_call.1} parent=1 // pred_check_branch
      %36 = sbr.rel (0) target = $region13
    $region12: #{tpu_custom_call.1} parent=1 // pred_region
      %s38 = ssub.s32 16, 16
      %39 = vsyncadd [#allocation6], %s38
      %s41 = sshll.u32 [#allocation7], 4
      %s42 = int_to_ptr.vmem [resolvable:$true] %s41
      %44 = dma.hbm_to_vmem [thread:$0]  %s2, 16, %s42, [#allocation6]
    $region13: #{tpu_custom_call.1} parent=1 // pred_fallthru
      _
    // Predicated region
    $region14: #{tpu_custom_call.1} parent=1 // pred_check
      _
    $region15: #{tpu_custom_call.1} parent=1 // pred_check_branch
      %46 = sbr.rel (0) target = $region17
    $region16: #{tpu_custom_call.1} parent=1 // pred_region
      %47 = dma.done [#allocation3], 512
    $region17: #{tpu_custom_call.1} parent=1 // pred_fallthru
      _
    // Predicated region
    $region18: #{tpu_custom_call.1} parent=1 // pred_check
      _
    $region19: #{tpu_custom_call.1} parent=1 // pred_check_branch
      %49 = sbr.rel (0) target = $region21
    $region20: #{tpu_custom_call.1} parent=1 // pred_region
      %50 = dma.done [#allocation6], 1536
    $region21: #{tpu_custom_call.1} parent=1 // pred_fallthru
      _
    // Predicated region
    $region22: #{tpu_custom_call.1} parent=1 // pred_check
      _
    $region23: #{tpu_custom_call.1} parent=1 // pred_check_branch
      %52 = sbr.rel (0) target = $region25
    $region24: #{tpu_custom_call.1} parent=1 // pred_region
      %53 = dma.done [#allocation6], 16
    $region25: #{tpu_custom_call.1} parent=1 // pred_fallthru
      _
    %v55 = vld [vmem:[#allocation2] sm:$0xff]
    %v56 = vld [vmem:[#allocation2 + $0x8] sm:$0xff]
    %v57 = vld [vmem:[#allocation2 + $0x10] sm:$0xff]
    %v58 = vld [vmem:[#allocation2 + $0x18] sm:$0xff]
    %v59 = vpack.c.bf16 %v56, %v55
    %v60 = vpack.c.bf16 %v58, %v57
    %v61 = vld [vmem:[#allocation5] sm:$0xff]
    %v62 = vld [vmem:[#allocation5 + $0x8] sm:$0xff]
    %v63 = vld [vmem:[#allocation5 + $0x10] sm:$0xff]
    %v64 = vld [vmem:[#allocation5 + $0x18] sm:$0xff]
    %v65 = vld [vmem:[#allocation5 + $0x20] sm:$0xff]
    %v66 = vld [vmem:[#allocation5 + $0x28] sm:$0xff]
    %v67 = vld [vmem:[#allocation5 + $0x30] sm:$0xff]
    %v68 = vld [vmem:[#allocation5 + $0x38] sm:$0xff]
    %v69 = vld [vmem:[#allocation5 + $0x40] sm:$0xff]
    %v70 = vld [vmem:[#allocation5 + $0x48] sm:$0xff]
    %v71 = vld [vmem:[#allocation5 + $0x50] sm:$0xff]
    %v72 = vld [vmem:[#allocation5 + $0x58] sm:$0xff]
    %v73 = vpack.c.bf16 %v62, %v61
    %v74 = vpack.c.bf16 %v64, %v63
    %v75 = vpack.c.bf16 %v66, %v65
    %v76 = vpack.c.bf16 %v68, %v67
    %v77 = vpack.c.bf16 %v70, %v69
    %v78 = vpack.c.bf16 %v72, %v71
    %v79 = vld [vmem:[#allocation7] sm:$0x1]
    %v81 = vlaneseq
    %v82 = vshrl.u32 %v81, 7
    %v83 = vsub.s32 0, %v82
    %v84 = vrot.slane %v79, %v83
    %vm86 = vcmask 261120
    %v88 = vsel %vm86, %v59, 0
    %v91 = vsel %vm86, %v60, 0
    %v94 = vsel %vm86, %v73, 0
    %v97 = vsel %vm86, %v74, 0
    %v100 = vsel %vm86, %v75, 0
    %v103 = vsel %vm86, %v76, 0
    %v106 = vsel %vm86, %v77, 0
    %v109 = vsel %vm86, %v78, 0
    %111 = vmatprep.subr.bf16.mxu0 0
    %112 = vmatpush1.bf16.xpose.msra.mxu0 %v94
    %113 = vmatprep.subr.bf16.mxu0 0
    %114 = vmatpush1.bf16.xpose.msra.mxu0 %v97
    %115 = vmatprep.subr.bf16.mxu0 0
    %116 = vmatpush1.bf16.xpose.msra.mxu0 %v100
    %117 = vmatprep.subr.bf16.mxu0 0
    %118 = vmatpush1.bf16.xpose.msra.mxu0 %v103
    %119 = vmatprep.subr.bf16.mxu0 0
    %120 = vmatpush1.bf16.xpose.msra.mxu0 %v106
    %121 = vmatprep.subr.bf16.mxu0 0
    %122 = vmatpush1.bf16.xpose.msra.mxu0 %v109
    %123 = vmatprep.subr.bf16.mxu0 0
    %124 = vmatpush1.bf16.xpose.msra.mxu0 0
    %125 = vmatprep.subr.bf16.mxu0 0
    %126 = vmatpush1.bf16.xpose.msra.mxu0 0
    %127 = vmatprep.subr.bf16.mxu0 0
    %128 = vmatpush1.bf16.xpose.msra.mxu0 0
    %129 = vmatprep.subr.bf16.mxu0 0
    %130 = vmatpush1.bf16.xpose.msra.mxu0 0
    %131 = vmatprep.subr.bf16.mxu0 0
    %132 = vmatpush1.bf16.xpose.msra.mxu0 0
    %133 = vmatprep.subr.bf16.mxu0 0
    %134 = vmatpush1.bf16.xpose.msra.mxu0 0
    %135 = vmatprep.subr.bf16.mxu0 0
    %136 = vmatpush1.bf16.xpose.msra.mxu0 0
    %137 = vmatprep.subr.bf16.mxu0 0
    %138 = vmatpush1.bf16.xpose.msra.mxu0 0
    %139 = vmatprep.subr.bf16.mxu0 0
    %140 = vmatpush1.bf16.xpose.msra.mxu0 0
    %141 = vmatprep.subr.bf16.mxu0 0
    %142 = vmatpush1.bf16.xpose.msra.mxu0 0
    %143 = vmatprep.mubr.bf16.mxu0 0
    %144 = vmatmul.mubr.bf16.gmra.mrb[0].mxu0 %v88
    %v145 = vpop.f32.mrb[0].mxu0
    %v146 = vadd.f32 %v84, %v145
    %v147 = vpop.f32.mrb[0].mxu0
    %v148 = vpop.f32.mrb[0].mxu0
    %v149 = vadd.f32 %v84, %v148
    %v150 = vpop.f32.mrb[0].mxu0
    %151 = vmatprep.mubr.bf16.mxu0 0
    %152 = vmatmul.mubr.bf16.gmra.mrb[0].mxu0 %v91
    %v153 = vpop.f32.mrb[0].mxu0
    %v154 = vadd.f32 %v84, %v153
    %v155 = vpop.f32.mrb[0].mxu0
    %v156 = vpop.f32.mrb[0].mxu0
    %v157 = vadd.f32 %v84, %v156
    %v158 = vpop.f32.mrb[0].mxu0
    %159 = vdwg.mxu0
    %vm160 = vcmask 785408
    %161 = vst.msk [vmem:[#allocation8] sm:$0xff] %vm160, %v146
    %162 = vst.msk [vmem:[#allocation8 + $0x8] sm:$0xff] %vm160, %v149
    %163 = vst.msk [vmem:[#allocation8 + $0x10] sm:$0xff] %vm160, %v154
    %164 = vst.msk [vmem:[#allocation8 + $0x18] sm:$0xff] %vm160, %v157
    // Predicated region
    $region26: #{tpu_custom_call.1} parent=1 // pred_check
      _
    $region27: #{tpu_custom_call.1} parent=1 // pred_check_branch
      %166 = sbr.rel (0) target = $region29
    $region28: #{tpu_custom_call.1} parent=1 // pred_region
      %s168 = ssub.s32 512, 512
      %169 = vsyncadd [#allocation4], %s168
      %s170 = sshll.u32 [#allocation8], 4
      %s171 = int_to_ptr.vmem [resolvable:$true] %s170
      %176 = dma.vmem_to_hbm [thread:$0]  %s171, 512, %s3, [#allocation4], 128, 128, 8
    $region29: #{tpu_custom_call.1} parent=1 // pred_fallthru
      _
    // Predicated region
    $region30: #{tpu_custom_call.1} parent=1 // pred_check
      _
    $region31: #{tpu_custom_call.1} parent=1 // pred_check_branch
      %178 = sbr.rel (0) target = $region33
    $region32: #{tpu_custom_call.1} parent=1 // pred_region
      %179 = dma.done [#allocation4], 512
    $region33: #{tpu_custom_call.1} parent=1 // pred_fallthru
      _
    %180 = vsyncpa [#allocation3], 1
    %181 = vsyncpa [#allocation6], 1
    %182 = vsyncpa [#allocation4], 1

</llo_original>
